<compile_context>
chip_gen: v7x
topology: tpu7x:2x2x1
jax: 0.10.0
libtpu: 0.0.40
codegen_flags: <defaults>
</compile_context>

<pallas_src>
import jax
import jax.numpy as jnp
import numpy as np
from jax.experimental import pallas as pl
from jax.experimental.pallas import tpu as pltpu

K = 3  # conv kernel size (3x3, padding=1 -> 'same')


# --------------------------- Pallas kernel ---------------------------------
def fourflips_kernel(pT_ref, w_ref, b_ref, o_ref):
    # pT_ref: (K*K*Cin, TM)   transposed im2col patch tile (pixels on lanes)
    # w_ref:  (Cout, K*K*Cin) flip-summed weights, pre-transposed
    # b_ref:  (Cout, 1)
    # o_ref:  (Cout, TM)      lane-dense output tile
    acc = jnp.dot(w_ref[...], pT_ref[...], preferred_element_type=jnp.float32)
    # mean over the 4 augmented passes (weights already summed) + bias,
    # then model.activate (sigmoid)
    o_ref[...] = jax.nn.sigmoid(acc * 0.25 + b_ref[...])


# ------------------------------ glue ----------------------------------------
def _im2col(x_nhwc):
    """(N,H,W,Cin) -> (N*H*W, K*K*Cin) patch matrix, zero 'same' padding."""
    n, h, w, cin = x_nhwc.shape
    xp = jnp.pad(x_nhwc, ((0, 0), (1, 1), (1, 1), (0, 0)))
    taps = [xp[:, dh:dh + h, dw:dw + w, :] for dh in range(K) for dw in range(K)]
    patches = jnp.stack(taps, axis=3)               # (N,H,W,K*K,Cin)
    return patches.reshape(n * h * w, K * K * cin)
# TODO(synk): for large N/H/W, fuse patch extraction into the kernel (halo DMA
# of NHWC row tiles or 9 shifted (Cin,Cout) matmuls) to avoid the 9x im2col
# HBM expansion; at this problem size the wrapper glue is negligible.


def four_flips_pallas(x_nchw, weight, bias, *, tm=None):
    """weight: (K,K,Cin,Cout) cross-correlation taps, bias: (Cout,)."""
    n, cin, h, w = x_nchw.shape
    cout = weight.shape[-1]
    rows = n * h * w
    assert rows % 128 == 0, "N*H*W must be a multiple of 128 (lane dim)"

    if tm is None:
        # Largest pixel-tile up to 2048 that divides `rows` while keeping
        # >= 2 grid steps (so v7x's two TensorCores both get work on the
        # "parallel" axis).  A (36, tm) f32 tile is tiny vs. any VMEM limit.
        tm = 128
        for cand in (256, 512, 1024, 2048):
            if rows % cand == 0 and rows // cand >= 2:
                tm = cand
    assert rows % tm == 0 and tm % 128 == 0

    x_nhwc = jnp.transpose(x_nchw, (0, 2, 3, 1))
    patches_t = _im2col(x_nhwc).T                   # (K*K*Cin, rows)

    # Fold the 4 flip-variant weights (identity, flip-H, flip-W, flip-HW):
    # sum_k(P @ W_k + b) == P @ sum_k(W_k) + 4b, so mean = 0.25*(P@Wsum) + b.
    w_sum = (weight
             + weight[::-1, :, :, :]
             + weight[:, ::-1, :, :]
             + weight[::-1, ::-1, :, :]).reshape(K * K * cin, cout)
    w_t = jnp.transpose(w_sum)                      # (Cout, K*K*Cin)
    b_col = bias.reshape(cout, 1)

    kk = K * K * cin
    cost = pl.CostEstimate(
        flops=2 * rows * kk * cout + 2 * rows * cout,
        transcendentals=rows * cout,
        bytes_accessed=4 * (rows * kk + cout * kk + cout + rows * cout),
    )

    out_t = pl.pallas_call(
        fourflips_kernel,
        out_shape=jax.ShapeDtypeStruct((cout, rows), jnp.float32),
        grid_spec=pltpu.PrefetchScalarGridSpec(
            num_scalar_prefetch=0,
            grid=(rows // tm,),
            in_specs=[
                pl.BlockSpec((kk, tm), lambda i: (0, i)),
                pl.BlockSpec((cout, kk), lambda i: (0, 0)),
                pl.BlockSpec((cout, 1), lambda i: (0, 0)),
            ],
            out_specs=pl.BlockSpec((cout, tm), lambda i: (0, i)),
        ),
        compiler_params=pltpu.CompilerParams(dimension_semantics=("parallel",)),
        cost_estimate=cost,
    )(patches_t, w_t, b_col)

    # (Cout, N*H*W) -> NCHW to match the PyTorch module's convention.
    return jnp.transpose(out_t.reshape(cout, n, h, w), (1, 0, 2, 3))


# --------------------------- pure-JAX reference ------------------------------
def _model_ref(x_nchw, weight, bias):
    w_oihw = jnp.transpose(weight, (3, 2, 0, 1))
    y = jax.lax.conv_general_dilated(
        x_nchw, w_oihw, window_strides=(1, 1), padding="SAME",
        dimension_numbers=("NCHW", "OIHW", "NCHW"))
    return y + bias.reshape(1, -1, 1, 1)


def fourflips_reference(x, weight, bias):
    out = _model_ref(x, weight, bias)
    out = out + jnp.flip(_model_ref(jnp.flip(x, 2), weight, bias), 2)
    out = out + jnp.flip(_model_ref(jnp.flip(x, 3), weight, bias), 3)
    out = out + jnp.flip(_model_ref(jnp.flip(x, (2, 3)), weight, bias), (2, 3))
    return jax.nn.sigmoid(out / 4)


# ------------------------------- main ----------------------------------------
if __name__ == "__main__":
    key = jax.random.PRNGKey(0)
    kx, kw, kb = jax.random.split(key, 3)

    N, C, H, W = 2, 4, 16, 16
    x = jax.random.normal(kx, (N, C, H, W), dtype=jnp.float32)
    # deterministic synthetic model parameters (Conv2d(C, C, 3, padding=1))
    weight = 0.1 * jax.random.normal(kw, (K, K, C, C), dtype=jnp.float32)
    bias = 0.1 * jax.random.normal(kb, (C,), dtype=jnp.float32)

    out = jax.block_until_ready(four_flips_pallas(x, weight, bias))
    ref = jax.block_until_ready(fourflips_reference(x, weight, bias))

    assert out.shape == (N, C, H, W)
    np.testing.assert_allclose(np.asarray(out), np.asarray(ref),
                               rtol=1e-4, atol=2e-5)
    print("KERNEL_OK")
</pallas_src>

<mosaic_0001>
module attributes {stable_mosaic.version = 11 : i64} {
  func.func @fourflips_kernel(%arg0: i32, %arg1: memref<36x256xf32, #tpu.memory_space<vmem>>, %arg2: memref<4x36xf32, #tpu.memory_space<vmem>>, %arg3: memref<4x1xf32, #tpu.memory_space<vmem>>, %arg4: memref<4x256xf32, #tpu.memory_space<vmem>>) attributes {dimension_semantics = [#tpu.dimension_semantics<parallel>], iteration_bounds = array<i64: 2>, scalar_prefetch = 0 : i64, scratch_operands = 0 : i64, tpu.core_type = #tpu.core_type<tc>, window_params = [{transform_indices = @transform_0, window_bounds = array<i64: 36, 256>}, {pipeline_mode = #tpu.pipeline_mode<synchronous>, transform_indices = @transform_1, window_bounds = array<i64: 4, 36>}, {pipeline_mode = #tpu.pipeline_mode<synchronous>, transform_indices = @transform_2, window_bounds = array<i64: 4, 1>}, {transform_indices = @transform_3, window_bounds = array<i64: 4, 256>}]} {
    %c0 = arith.constant 0 : index
    %c0_0 = arith.constant 0 : index
    %0 = vector.load %arg2[%c0, %c0_0] : memref<4x36xf32, #tpu.memory_space<vmem>>, vector<4x36xf32>
    %c0_1 = arith.constant 0 : index
    %c0_2 = arith.constant 0 : index
    %1 = vector.load %arg1[%c0_1, %c0_2] : memref<36x256xf32, #tpu.memory_space<vmem>>, vector<36x256xf32>
    %cst = arith.constant dense<0.000000e+00> : vector<4x256xf32>
    %2 = tpu.matmul %0, %1, %cst {dimension_numbers = #tpu.dot_dimension_numbers<[1], [0], [0], [1], [0, 0, 1, 1], [], []>} : vector<4x36xf32>, vector<36x256xf32>, vector<4x256xf32> -> vector<4x256xf32>
    %cst_3 = arith.constant 2.500000e-01 : f32
    %3 = vector.broadcast %cst_3 : f32 to vector<4x256xf32>
    %4 = arith.mulf %2, %3 : vector<4x256xf32>
    %c0_4 = arith.constant 0 : index
    %c0_5 = arith.constant 0 : index
    %5 = vector.load %arg3[%c0_4, %c0_5] : memref<4x1xf32, #tpu.memory_space<vmem>>, vector<4x1xf32>
    %6 = vector.broadcast %5 : vector<4x1xf32> to vector<4x256xf32>
    %7 = arith.addf %4, %6 : vector<4x256xf32>
    %8 = arith.negf %7 : vector<4x256xf32>
    %9 = math.exp %8 : vector<4x256xf32>
    %cst_6 = arith.constant 1.000000e+00 : f32
    %10 = vector.broadcast %cst_6 : f32 to vector<4x256xf32>
    %11 = arith.addf %10, %9 : vector<4x256xf32>
    %12 = arith.divf %10, %11 : vector<4x256xf32>
    %c0_7 = arith.constant 0 : index
    %c0_8 = arith.constant 0 : index
    %13 = vector.load %arg4[%c0_7, %c0_8] : memref<4x256xf32, #tpu.memory_space<vmem>>, vector<4x256xf32>
    tpu.vector_store %arg4[%c0_7, %c0_8], %12 {strides = array<i32>} : memref<4x256xf32, #tpu.memory_space<vmem>>, vector<4x256xf32>,
    return
  }
  func.func @transform_0(%arg0: i32) -> (i32, i32) {
    %c0_i32 = arith.constant 0 : i32
    %c0_i32_0 = arith.constant 0 : i32
    return %c0_i32, %arg0 : i32, i32
  }
  func.func @transform_1(%arg0: i32) -> (i32, i32) {
    %c0_i32 = arith.constant 0 : i32
    %c0_i32_0 = arith.constant 0 : i32
    %c0_i32_1 = arith.constant 0 : i32
    return %c0_i32, %c0_i32_0 : i32, i32
  }
  func.func @transform_2(%arg0: i32) -> (i32, i32) {
    %c0_i32 = arith.constant 0 : i32
    %c0_i32_0 = arith.constant 0 : i32
    %c0_i32_1 = arith.constant 0 : i32
    return %c0_i32, %c0_i32_0 : i32, i32
  }
  func.func @transform_3(%arg0: i32) -> (i32, i32) {
    %c0_i32 = arith.constant 0 : i32
    %c0_i32_0 = arith.constant 0 : i32
    return %c0_i32, %arg0 : i32, i32
  }
}

</mosaic_0001>

<llo_original>
// kernel: tpu_custom_call.1
$region0: #{tpu_custom_call.1}
  #allocation0 [shape = 'u32[]', space=smem, size = 0x4, offset = 0x4, fixed_abs, tag = 'smem constant byte address 0x4 - core index']
  #allocation1 [shape = 'u32[144,128]{1,0:T(1,128)}', space=vmem, size = 0x12000, scoped, tag = 'internal scratch']
  %s0 = inlined_call_operand.hbm [shape: f32[36,512], index: 0, kind: input, shape index: {}]
  %s1 = inlined_call_operand.vmem [shape: f32[4,36], index: 1, kind: input, shape index: {}]
  %s2 = inlined_call_operand.vmem [shape: f32[4,1], index: 2, kind: input, shape index: {}]
  %s3 = inlined_call_operand.hbm [shape: f32[4,512], index: 3, kind: output, shape index: {}]
  %s4 = sld [smem:[#allocation0]]
  $region49: #{tpu_custom_call.1} parent=0
    _
  %s6 = ssub.s32 1, %s4
  %s7 = scalar_select 0, %s6, %s4
  $region1: #{tpu_custom_call.1} parent=0
    #allocation2 [shape = 'u8[81920]{0}', space=vmem, size = 0x14000, scoped, tag = 'input window, operand 0']
    #allocation3 [shape = 's32[2]{0}', space=sflag, size = 0x8, scoped, tag = 'scoped memory for tpu_custom_call.1']
    #allocation4 [shape = 's32[2]{0}', space=sflag, size = 0x8, scoped, tag = 'scoped memory for tpu_custom_call.1']
    #allocation5 [shape = 'u8[8192]{0}', space=vmem, size = 0x2000, scoped, tag = 'output window, operand 0']
    %8 = vsyncpa [#allocation3], 0
    %s9 = scalar_lea.sflag [#allocation3], 1
    %10 = vsyncpa %s9, 0
    %11 = vsyncpa [#allocation4], 0
    %s12 = scalar_lea.sflag [#allocation4], 1
    %13 = vsyncpa %s12, 0
    loop: start=0, step=1, limit=4
    $region2: #{tpu_custom_call.1} parent=1 // loop_pre_header
      _
    $region3: #{tpu_custom_call.1} parent=1 // loop_header
      %s15 = sphi 0, %s19
      %p16 = scmp.ge.s32.totalorder %s15, 4
      %s25 = sphi 0, %s27
      %s28 = sphi 0, %s25
      %s29 = sphi 0, %s28
      %s45 = sphi 0, %s29
      %s49 = sphi 0, %s49
      %s51 = sphi 0, %s49
      %s52 = sphi 0, %s51
      %s66 = sphi 0, %s52
      %s70 = sphi 0, %s70
      %s72 = sphi 0, %s70
      %s73 = sphi 0, %s72
      %s87 = sphi 0, %s73
      %s93 = sphi 0, %s95
      %s96 = sphi 0, %s93
      %s97 = sphi 0, %s96
      %s113 = sphi 0, %s97
    $region4: #{tpu_custom_call.1} parent=1 // loop_header_branch
      %18 = sbr.rel (%p16) target = $region8
    $region5: #{tpu_custom_call.1} parent=1 // loop_body
      %s20 = ssub.s32 %s15, 1
      %s21 = ssub.s32 %s15, 2
      %s22 = sadd.s32 %s15, 1
      %s23 = ssub.s32 %s15, %s22
      %p24 = scmp.eq.s32.totalorder %s23, 0
      %s26 = sadd.s32 %s25, 1
      %s27 = scalar_select %p24, %s25, %s26
      %p30 = pneg %p24
      %p31 = scmp.eq.s32.totalorder %s15, 1
      %p32 = por %p30, %p31
      %p33 = scmp.ne.s32.totalorder %s25, %s28
      %p34 = scmp.eq.s32.totalorder %s15, 0
      %p35 = por %p33, %p34
      %p36 = scmp.ne.s32.totalorder %s25, %s28
      %p37 = scmp.eq.s32.totalorder %s20, 1
      %p38 = por %p36, %p37
      %p39 = scmp.ne.s32.totalorder %s28, %s29
      %p40 = scmp.eq.s32.totalorder %s20, 0
      %p41 = por %p39, %p40
      %p42 = scmp.ne.s32.totalorder %s28, %s29
      %p43 = scmp.eq.s32.totalorder %s21, 1
      %p44 = por %p42, %p43
      %p46 = scmp.ne.s32.totalorder %s29, %s45
      %p47 = scmp.eq.s32.totalorder %s21, 0
      %p48 = por %p46, %p47
      %s50 = sadd.s32 %s49, 1
      %p53 = scmp.eq.s32.totalorder %s15, 1
      %p54 = scmp.ne.s32.totalorder %s49, %s51
      %p55 = scmp.eq.s32.totalorder %s15, 0
      %p56 = por %p54, %p55
      %p57 = scmp.ne.s32.totalorder %s49, %s51
      %p58 = scmp.eq.s32.totalorder %s20, 1
      %p59 = por %p57, %p58
      %p60 = scmp.ne.s32.totalorder %s51, %s52
      %p61 = scmp.eq.s32.totalorder %s20, 0
      %p62 = por %p60, %p61
      %p63 = scmp.ne.s32.totalorder %s51, %s52
      %p64 = scmp.eq.s32.totalorder %s21, 1
      %p65 = por %p63, %p64
      %p67 = scmp.ne.s32.totalorder %s52, %s66
      %p68 = scmp.eq.s32.totalorder %s21, 0
      %p69 = por %p67, %p68
      %s71 = sadd.s32 %s70, 1
      %p74 = scmp.eq.s32.totalorder %s15, 1
      %p75 = scmp.ne.s32.totalorder %s70, %s72
      %p76 = scmp.eq.s32.totalorder %s15, 0
      %p77 = por %p75, %p76
      %p78 = scmp.ne.s32.totalorder %s70, %s72
      %p79 = scmp.eq.s32.totalorder %s20, 1
      %p80 = por %p78, %p79
      %p81 = scmp.ne.s32.totalorder %s72, %s73
      %p82 = scmp.eq.s32.totalorder %s20, 0
      %p83 = por %p81, %p82
      %p84 = scmp.ne.s32.totalorder %s72, %s73
      %p85 = scmp.eq.s32.totalorder %s21, 1
      %p86 = por %p84, %p85
      %p88 = scmp.ne.s32.totalorder %s73, %s87
      %p89 = scmp.eq.s32.totalorder %s21, 0
      %p90 = por %p88, %p89
      %s91 = ssub.s32 %s15, %s22
      %p92 = scmp.eq.s32.totalorder %s91, 0
      %s94 = sadd.s32 %s93, 1
      %s95 = scalar_select %p92, %s93, %s94
      %p98 = pneg %p92
      %p99 = scmp.eq.s32.totalorder %s15, 1
      %p100 = por %p98, %p99
      %p101 = scmp.ne.s32.totalorder %s93, %s96
      %p102 = scmp.eq.s32.totalorder %s15, 0
      %p103 = por %p101, %p102
      %p104 = scmp.ne.s32.totalorder %s93, %s96
      %p105 = scmp.eq.s32.totalorder %s20, 1
      %p106 = por %p104, %p105
      %p107 = scmp.ne.s32.totalorder %s96, %s97
      %p108 = scmp.eq.s32.totalorder %s20, 0
      %p109 = por %p107, %p108
      %p110 = scmp.ne.s32.totalorder %s96, %s97
      %p111 = scmp.eq.s32.totalorder %s21, 1
      %p112 = por %p110, %p111
      %p114 = scmp.ne.s32.totalorder %s97, %s113
      %p115 = scmp.eq.s32.totalorder %s21, 0
      %p116 = por %p114, %p115
      %p117 = scmp.le.s32.totalorder 1, %s15
      %p118 = scmp.lt.s32.totalorder %s15, 3
      %p119 = pnand %p117, %p118
      %p120 = pneg %p119
      // Predicated region
      $region9: #{tpu_custom_call.1} parent=5 // pred_check
        _
      $region10: #{tpu_custom_call.1} parent=5 // pred_check_branch
        %122 = sbr.rel (%p119) target = $region12
      $region11: #{tpu_custom_call.1} parent=5 // pred_region
        %s123 = ssub.s32 %s15, 1
        // Predicated region
        $region13: #{tpu_custom_call.1} parent=11 // pred_check
          %p124 = pneg %p62
        $region14: #{tpu_custom_call.1} parent=11 // pred_check_branch
          %126 = sbr.rel (%p124) target = $region16
        $region15: #{tpu_custom_call.1} parent=11 // pred_region
          _
        $region16: #{tpu_custom_call.1} parent=11 // pred_fallthru
          _
        // Predicated region
        $region17: #{tpu_custom_call.1} parent=11 // pred_check
          %p127 = pneg %p83
        $region18: #{tpu_custom_call.1} parent=11 // pred_check_branch
          %129 = sbr.rel (%p127) target = $region20
        $region19: #{tpu_custom_call.1} parent=11 // pred_region
          _
        $region20: #{tpu_custom_call.1} parent=11 // pred_fallthru
          _
      $region12: #{tpu_custom_call.1} parent=5 // pred_fallthru
        _
      %p130 = scmp.lt.s32.totalorder %s15, 2
      // Predicated region
      $region21: #{tpu_custom_call.1} parent=5 // pred_check
        %p131 = pneg %p130
      $region22: #{tpu_custom_call.1} parent=5 // pred_check_branch
        %133 = sbr.rel (%p131) target = $region24
      $region23: #{tpu_custom_call.1} parent=5 // pred_region
        // Predicated region
        $region25: #{tpu_custom_call.1} parent=23 // pred_check
          %p134 = pneg %p35
        $region26: #{tpu_custom_call.1} parent=23 // pred_check_branch
          %136 = sbr.rel (%p134) target = $region28
        $region27: #{tpu_custom_call.1} parent=23 // pred_region
          %s137 = sand.u32 %s25, 1
          %s138 = scalar_lea.sflag [#allocation3], %s137
          %s139 = sand.u32 %s25, 1
          %s140 = smul.addr %s139, 80
          %s141 = scalar_lea.vmem [#allocation2], %s140
          %s142 = smul.u32 2, %s15
          %s144 = ssub.s32 1280, 1280
          %145 = vsyncadd %s138, %s144
          %s146 = smul.addr %s142, 128
          %s147 = scalar_lea.hbm %s0, %s146
          %s148 = sshll.u32 %s141, 4
          %s149 = int_to_ptr.vmem [resolvable:$true] %s148
          %154 = dma.hbm_to_vmem [thread:$0]  %s147, 1280, %s149, %s138, 512, 256, 16
        $region28: #{tpu_custom_call.1} parent=23 // pred_fallthru
          _
      $region24: #{tpu_custom_call.1} parent=5 // pred_fallthru
        _
      %p155 = scmp.le.s32.totalorder 1, %s15
      %p156 = scmp.lt.s32.totalorder %s15, 3
      %p157 = pnand %p155, %p156
      %p158 = pneg %p157
      // Predicated region
      $region29: #{tpu_custom_call.1} parent=5 // pred_check
        _
      $region30: #{tpu_custom_call.1} parent=5 // pred_check_branch
        %160 = sbr.rel (%p157) target = $region32
      $region31: #{tpu_custom_call.1} parent=5 // pred_region
        %s161 = ssub.s32 %s15, 1
        %s162 = sand.u32 %s28, 1
        %s163 = scalar_lea.sflag [#allocation3], %s162
        %s164 = sand.u32 %s28, 1
        %s165 = smul.addr %s164, 80
        %s166 = scalar_lea.vmem [#allocation2], %s165
        // Predicated region
        $region33: #{tpu_custom_call.1} parent=31 // pred_check
          %p167 = pneg %p41
        $region34: #{tpu_custom_call.1} parent=31 // pred_check_branch
          %169 = sbr.rel (%p167) target = $region36
        $region35: #{tpu_custom_call.1} parent=31 // pred_region
          %170 = dma.done %s163, 1280
        $region36: #{tpu_custom_call.1} parent=31 // pred_fallthru
          _
        %s171 = sand.u32 %s28, 1
        %s172 = scalar_lea.sflag [#allocation3], %s171
        %s173 = sand.u32 %s28, 1
        %s174 = smul.addr %s173, 80
        %s175 = scalar_lea.vmem [#allocation2], %s174
        %p176 = pneg %p41
        %p177 = pneg %p38
        %p178 = pneg %p62
        %p179 = pneg %p59
        %p180 = pneg %p83
        %p181 = pneg %p80
        %p182 = pneg %p109
        %p183 = pneg %p106
        %s184 = sand.u32 %s96, 1
        %s185 = scalar_lea.sflag [#allocation4], %s184
        %s186 = sand.u32 %s96, 1
        %s187 = smul.addr %s186, 8
        %s188 = scalar_lea.vmem [#allocation5], %s187
        %s189 = smul.u32 2, %s20
        %s190 = smul.u32 2, %s20
        %v191 = vld [vmem:[%s1] sm:$0xf]
        %v192 = vld [vmem:[%s166] sm:$0xff]
        %v193 = vld [vmem:[%s166 + $0x8] sm:$0xff]
        %v194 = vld [vmem:[%s166 + $0x10] sm:$0xff]
        %v195 = vld [vmem:[%s166 + $0x18] sm:$0xff]
        %v196 = vld [vmem:[%s166 + $0x20] sm:$0xff]
        %v197 = vld [vmem:[%s166 + $0x28] sm:$0xff]
        %v198 = vld [vmem:[%s166 + $0x30] sm:$0xff]
        %v199 = vld [vmem:[%s166 + $0x38] sm:$0xff]
        %v200 = vld [vmem:[%s166 + $0x40] sm:$0xf]
        %v201 = vld [vmem:[%s166 + $0x48] sm:$0xf]
        %vm202 = vcmask 293888
        %v204 = vsel %vm202, %v191, 0
        %vm206 = vcmask 1043456
        %v208 = vsel %vm206, %v200, 0
        %v211 = vsel %vm206, %v201, 0
        %213 = vmatprep.subr.mxu0 %v193
        %214 = vmatpush1.msra.mxu0 %v192
        %215 = vmatprep.subr.mxu0 %v195
        %216 = vmatpush1.msra.mxu0 %v194
        %217 = vmatprep.subr.mxu0 %v197
        %218 = vmatpush1.msra.mxu0 %v196
        %219 = vmatprep.subr.mxu0 %v199
        %220 = vmatpush1.msra.mxu0 %v198
        %221 = vmatprep.subr.mxu0 %v211
        %222 = vmatpush1.msra.mxu0 %v208
        %223 = vmatprep.subr.mxu0 0.0
        %224 = vmatpush1.msra.mxu0 0.0
        %225 = vmatprep.subr.mxu0 0.0
        %226 = vmatpush1.msra.mxu0 0.0
        %227 = vmatprep.subr.mxu0 0.0
        %228 = vmatpush1.msra.mxu0 0.0
        %229 = vmatprep.subr.mxu0 0.0
        %230 = vmatpush1.msra.mxu0 0.0
        %231 = vmatprep.subr.mxu0 0.0
        %232 = vmatpush1.msra.mxu0 0.0
        %233 = vmatprep.subr.mxu0 0.0
        %234 = vmatpush1.msra.mxu0 0.0
        %235 = vmatprep.subr.mxu0 0.0
        %236 = vmatpush1.msra.mxu0 0.0
        %237 = vmatprep.subr.mxu0 0.0
        %238 = vmatpush1.msra.mxu0 0.0
        %239 = vmatprep.subr.mxu0 0.0
        %240 = vmatpush1.msra.mxu0 0.0
        %241 = vmatprep.subr.mxu0 0.0
        %242 = vmatpush1.msra.mxu0 0.0
        %243 = vmatprep.subr.mxu0 0.0
        %244 = vmatpush1.msra.mxu0 0.0
        %245 = vmatprep.subr.mxu0 0.0
        %246 = vmatpush1.msra.mxu0 0.0
        %247 = vmatprep.subr.mxu0 0.0
        %248 = vmatpush1.msra.mxu0 0.0
        %249 = vmatprep.subr.mxu0 0.0
        %250 = vmatpush1.msra.mxu0 0.0
        %251 = vmatprep.subr.mxu0 0.0
        %252 = vmatpush1.msra.mxu0 0.0
        %253 = vmatprep.subr.mxu0 0.0
        %254 = vmatpush1.msra.mxu0 0.0
        %255 = vmatprep.subr.mxu0 0.0
        %256 = vmatpush1.msra.mxu0 0.0
        %257 = vmatprep.subr.mxu0 0.0
        %258 = vmatpush1.msra.mxu0 0.0
        %259 = vmatprep.subr.mxu0 0.0
        %260 = vmatpush1.msra.mxu0 0.0
        %261 = vmatprep.subr.mxu0 0.0
        %262 = vmatpush1.msra.mxu0 0.0
        %263 = vmatprep.subr.mxu0 0.0
        %264 = vmatpush1.msra.mxu0 0.0
        %265 = vmatprep.subr.mxu0 0.0
        %266 = vmatpush1.msra.mxu0 0.0
        %267 = vmatprep.subr.mxu0 0.0
        %268 = vmatpush1.msra.mxu0 0.0
        %269 = vmatprep.subr.mxu0 0.0
        %270 = vmatpush1.msra.mxu0 0.0
        %271 = vmatprep.subr.mxu0 0.0
        %272 = vmatpush1.msra.mxu0 0.0
        %273 = vmatprep.subr.mxu0 0.0
        %274 = vmatpush1.msra.mxu0 0.0
        %275 = vmatprep.subr.mxu0 0.0
        %276 = vmatpush1.msra.mxu0 0.0
        %277 = vmatprep.mubr.f32.mxu0 0.0
        %278 = vmatmul.mubr.f32.gmra.mrb[0].mxu0 %v204
        %v279 = vpop.f32.mrb[0].mxu0
        %v280 = vadd.f32 0.0, %v279
        %v281 = vpop.f32.mrb[0].mxu0
        %v282 = vadd.f32 0.0, %v281
        %283 = vdwg.mxu0
        %v284 = vmul.f32 %v280, 0.25
        %v285 = vmul.f32 %v282, 0.25
        %v286 = vld [vmem:[%s2] sm:$0xf]
        %288 = vset.pattern.permute.xlu0 0
        %289 = vperm.xlu0 %288, %v286
        %v290 = vpop.permute.xlu0 %289
        %v292 = vadd.f32 %v284, %v290
        %v293 = vadd.f32 %v285, %v290
        %v294 = vxor.u32 %v292, 2147483648
        %v295 = vxor.u32 %v293, 2147483648
        %v296 = vmul.f32 %v294, 1.442695
        %v297 = vpow.pop %v296
        %v298 = vmul.f32 %v295, 1.442695
        %v299 = vpow.pop %v298
        %v300 = vadd.f32 %v297, 1.0
        %v301 = vadd.f32 %v299, 1.0
        %v302 = vrcp.pop %v300
        %v303 = vmul.f32 1.0, %v302
        %v304 = vrcp.pop %v301
        %v305 = vmul.f32 1.0, %v304
        %v308 = vcombine.low %v303, %v305
        %310 = vst [vmem:[%s188] sm:$0xff] %v308
        %s311 = sand.u32 %s96, 1
        %s312 = scalar_lea.sflag [#allocation4], %s311
        %s313 = sand.u32 %s96, 1
        %s314 = smul.addr %s313, 8
        %s315 = scalar_lea.vmem [#allocation5], %s314
        // Predicated region
        $region37: #{tpu_custom_call.1} parent=31 // pred_check
          %p316 = pneg %p106
        $region38: #{tpu_custom_call.1} parent=31 // pred_check_branch
          %318 = sbr.rel (%p316) target = $region40
        $region39: #{tpu_custom_call.1} parent=31 // pred_region
          %s319 = smul.u32 2, %s20
          %s321 = ssub.s32 128, 128
          %322 = vsyncadd %s312, %s321
          %s323 = smul.addr %s319, 64
          %s324 = scalar_lea.hbm %s3, %s323
          %s326 = sshll.u32 %s315, 4
          %s327 = int_to_ptr.vmem [resolvable:$true] %s326
          %329 = dma.vmem_to_hbm [thread:$0]  %s327, 128, %s324, %s312
        $region40: #{tpu_custom_call.1} parent=31 // pred_fallthru
          _
      $region32: #{tpu_custom_call.1} parent=5 // pred_fallthru
        _
      %p330 = scmp.le.s32.totalorder 2, %s15
      // Predicated region
      $region41: #{tpu_custom_call.1} parent=5 // pred_check
        %p331 = pneg %p330
      $region42: #{tpu_custom_call.1} parent=5 // pred_check_branch
        %333 = sbr.rel (%p331) target = $region44
      $region43: #{tpu_custom_call.1} parent=5 // pred_region
        %s334 = ssub.s32 %s15, 2
        // Predicated region
        $region45: #{tpu_custom_call.1} parent=43 // pred_check
          %p335 = pneg %p112
        $region46: #{tpu_custom_call.1} parent=43 // pred_check_branch
          %337 = sbr.rel (%p335) target = $region48
        $region47: #{tpu_custom_call.1} parent=43 // pred_region
          %s338 = sand.u32 %s97, 1
          %s339 = scalar_lea.sflag [#allocation4], %s338
          %s340 = sand.u32 %s97, 1
          %s341 = smul.addr %s340, 8
          %s342 = scalar_lea.vmem [#allocation5], %s341
          %343 = dma.done %s339, 128
        $region48: #{tpu_custom_call.1} parent=43 // pred_fallthru
          _
      $region44: #{tpu_custom_call.1} parent=5 // pred_fallthru
        _
    $region6: #{tpu_custom_call.1} parent=1 // loop_footer
      %s19 = sadd.s32 1, %s15
    $region7: #{tpu_custom_call.1} parent=1 // loop_footer_branch
      %14 = sbr.rel target = $region3
    $region8: #{tpu_custom_call.1} parent=1 // loop_exit
      _
    %344 = vsyncpa [#allocation3], 1
    %s345 = scalar_lea.sflag [#allocation3], 1
    %346 = vsyncpa %s345, 1
    %347 = vsyncpa [#allocation4], 1
    %s348 = scalar_lea.sflag [#allocation4], 1
    %349 = vsyncpa %s348, 1

</llo_original>
